<compile_context>
chip_gen: v7x
topology: tpu7x:2x2x1
jax: 0.10.0
libtpu: 0.0.40
codegen_flags: <defaults>
</compile_context>

<pallas_src>
import functools

import jax
import jax.numpy as jnp
from jax import lax
from jax.experimental import pallas as pl
from jax.experimental.pallas import tpu as pltpu


def _conv_block_down_kernel(xs_ref, w1_ref, b1_ref, w2_ref, b2_ref,
                            skip_ref, pooled_ref, *, H, Cout):
    """One block of `batch_tile` images, rows R = batch_tile * H, lane-dense.

    xs_ref    : (R, 3*W*Cin)       bf16  dy-stacked, H-padded conv1 LHS.
    w1_ref    : (3*W*Cin, W*Cout)  bf16  fused block-Toeplitz conv1 weights.
    b1_ref    : (1, W*Cout)        f32.
    w2_ref    : (3*W*Cout, W*Cout) bf16  fused block-Toeplitz conv2 weights.
    b2_ref    : (1, W*Cout)        f32.
    skip_ref  : (R, W*Cout)        output 1.
    pooled_ref: (R//2, W*Cout)     output 2 (even-w lane groups valid).
    """
    R, wc = skip_ref.shape

    # ---- conv1 (3x3, pad 1) + bias + ReLU: one MXU matmul ----
    acc1 = jnp.dot(xs_ref[...], w1_ref[...], preferred_element_type=jnp.float32)
    y1 = jnp.maximum(acc1 + b1_ref[...], 0.0)                      # (R, wc) f32

    # ---- conv2 (3x3, pad 1) + bias + ReLU: one MXU matmul ----
    # dy = -1 / +1 row shifts with per-image zero padding.  Everything stays
    # f32 (clean sublane slices) until one contiguous cast to bf16.
    row = lax.broadcasted_iota(jnp.int32, (R, wc), 0) % H           # h within image
    zrow = jnp.zeros((1, wc), jnp.float32)
    y1p = jnp.concatenate([zrow, y1, zrow], axis=0)                 # (R+2, wc)
    up = jnp.where(row == 0, 0.0, y1p[0:R, :])                      # y1[h-1]
    dn = jnp.where(row == H - 1, 0.0, y1p[2:R + 2, :])              # y1[h+1]
    lhs2 = jnp.concatenate([up, y1, dn], axis=-1).astype(jnp.bfloat16)
    acc2 = jnp.dot(lhs2, w2_ref[...], preferred_element_type=jnp.float32)
    skip = jnp.maximum(acc2 + b2_ref[...], 0.0)                     # (R, wc) f32
    skip_ref[...] = skip.astype(skip_ref.dtype)

    # ---- 2x2 max-pool, stride 2, from the skip values still in vregs ----
    hp = jnp.max(skip.reshape(R // 2, 2, wc), axis=1)               # H-pairs (VPU)
    # W-pairs: roll by one channel group along lanes (XLU) + max (VPU).
    # Even-w lane groups now hold the pooled values; odd groups are padding
    # kept only so the store is a full-128-lane unmasked vst.
    maxed = jnp.maximum(hp, pltpu.roll(hp, shift=wc - Cout, axis=1))
    pooled_ref[...] = maxed.astype(pooled_ref.dtype)


def _fused_toeplitz(w_oihw, width):
    """OIHW (Cout, Cin, 3, 3) -> (3*W*Cin, W*Cout) fused block-Toeplitz matrix.

    T[dy*W*Cin + wi*Cin + ci, wo*Cout + co] = w[co, ci, dy, wi - wo + 1]
    (zero outside the 3-tap window), baking all 9 taps and the SAME width
    padding into a single lane-dense contraction.
    """
    Cout, Cin, KH, KW = w_oihw.shape
    assert KH == 3 and KW == 3
    W = width
    dy = jnp.arange(3)[:, None, None, None, None]
    wi = jnp.arange(W)[None, :, None, None, None]
    ci = jnp.arange(Cin)[None, None, :, None, None]
    wo = jnp.arange(W)[None, None, None, :, None]
    co = jnp.arange(Cout)[None, None, None, None, :]
    dx = wi - wo + 1
    valid = (dx >= 0) & (dx <= 2)
    vals = w_oihw[co, ci, dy, jnp.clip(dx, 0, 2)]       # (3, W, Cin, W, Cout)
    vals = jnp.where(valid, vals, 0.0)
    return vals.reshape(3 * W * Cin, W * Cout)


def prepare_conv_block_down_params(w1, b1, w2, b2, width):
    """Weight-only prep (O(W^2) Toeplitz construction). Do ONCE at param init."""
    W = width
    Cout = w1.shape[0]
    wc = W * Cout
    return dict(
        w1t=_fused_toeplitz(w1.astype(jnp.float32), W).astype(jnp.bfloat16),
        w2t=_fused_toeplitz(w2.astype(jnp.float32), W).astype(jnp.bfloat16),
        b1t=jnp.tile(b1.astype(jnp.float32), W).reshape(1, wc),
        b2t=jnp.tile(b2.astype(jnp.float32), W).reshape(1, wc),
    )


def _pick_batch_tile(N, H, target_rows=128):
    """Fold enough batch elements per grid step that the MXU M dim >= target."""
    nb = max(1, min(N, target_rows // max(H, 1)))
    while N % nb:
        nb -= 1
    return nb


def conv_block_down(x_nchw, params, *, out_dtype=jnp.float32):
    """x_nchw: (N, Cin, H, W). Returns (skip, pooled) in NCHW like the module."""
    N, Cin, H, W = x_nchw.shape
    wc = params["b1t"].shape[-1]
    Cout = wc // W
    assert H % 2 == 0 and W % 2 == 0

    nb = _pick_batch_tile(N, H)          # batch elements folded into M per step
    R = nb * H

    # Layout glue (XLA): NCHW -> lane-dense rows, H-pad, dy-stack, bf16.
    # TODO(synk): in a full UNet keep activations lane-dense between blocks so
    # these transposes are paid once, not around every block.
    x_lane = jnp.transpose(x_nchw, (0, 2, 3, 1)).reshape(N, H, W * Cin)
    x_pad = jnp.pad(x_lane, ((0, 0), (1, 1), (0, 0)))
    x_stack = jnp.concatenate(
        [x_pad[:, 0:H], x_pad[:, 1:H + 1], x_pad[:, 2:H + 2]], axis=-1)
    x_stack = x_stack.reshape(N * H, 3 * W * Cin).astype(jnp.bfloat16)

    kernel = functools.partial(_conv_block_down_kernel, H=H, Cout=Cout)

    skip_flat, pooled_pad = pl.pallas_call(
        kernel,
        out_shape=(jax.ShapeDtypeStruct((N * H, wc), out_dtype),
                   jax.ShapeDtypeStruct((N * H // 2, wc), out_dtype)),
        grid_spec=pltpu.PrefetchScalarGridSpec(
            num_scalar_prefetch=0,
            grid=(N // nb,),
            in_specs=[
                pl.BlockSpec((R, 3 * W * Cin), lambda i: (i, 0)),
                # Grid-invariant weights/biases (for production sizes these
                # would also be single-buffered / W-tiled).
                pl.BlockSpec((3 * W * Cin, wc), lambda i: (0, 0)),
                pl.BlockSpec((1, wc), lambda i: (0, 0)),
                pl.BlockSpec((3 * wc, wc), lambda i: (0, 0)),
                pl.BlockSpec((1, wc), lambda i: (0, 0)),
            ],
            out_specs=[
                pl.BlockSpec((R, wc), lambda i: (i, 0)),
                pl.BlockSpec((R // 2, wc), lambda i: (i, 0)),
            ]),
        compiler_params=pltpu.CompilerParams(
            dimension_semantics=("parallel",),
            vmem_limit_bytes=32 * 1024 * 1024),
    )(x_stack, params["w1t"], params["b1t"], params["w2t"], params["b2t"])

    skip = jnp.transpose(skip_flat.reshape(N, H, W, Cout), (0, 3, 1, 2))
    # Strip the odd-w padding groups from the lane-dense pooled slab.
    pooled = jnp.transpose(
        pooled_pad.reshape(N, H // 2, W, Cout)[:, :, 0::2, :], (0, 3, 1, 2))
    return skip, pooled


def _reference(x, w1, b1, w2, b2):
    """f32 reference with the same bf16 weight/activation rounding the kernel uses."""
    bf = lambda a: a.astype(jnp.bfloat16).astype(jnp.float32)
    dn = ('NCHW', 'OIHW', 'NCHW')
    y = lax.conv_general_dilated(bf(x), bf(w1), (1, 1), 'SAME',
                                 dimension_numbers=dn,
                                 precision=lax.Precision.HIGHEST)
    y = jnp.maximum(y + b1[None, :, None, None], 0.0)
    y = lax.conv_general_dilated(bf(y), bf(w2), (1, 1), 'SAME',
                                 dimension_numbers=dn,
                                 precision=lax.Precision.HIGHEST)
    skip = jnp.maximum(y + b2[None, :, None, None], 0.0)
    pooled = lax.reduce_window(skip, -jnp.inf, lax.max,
                               (1, 1, 2, 2), (1, 1, 2, 2), 'VALID')
    return skip, pooled


if __name__ == "__main__":
    N, Cin, Cout, H, W = 2, 4, 8, 16, 16

    key = jax.random.PRNGKey(0)
    kx, kw1, kb1, kw2, kb2 = jax.random.split(key, 5)
    x = jax.random.normal(kx, (N, Cin, H, W), jnp.float32)
    # Synthetic parameters with shapes per nn.Conv2d(in, out, 3, padding=1).
    w1 = jax.random.normal(kw1, (Cout, Cin, 3, 3), jnp.float32) * 0.2
    b1 = jax.random.normal(kb1, (Cout,), jnp.float32) * 0.1
    w2 = jax.random.normal(kw2, (Cout, Cout, 3, 3), jnp.float32) * 0.2
    b2 = jax.random.normal(kb2, (Cout,), jnp.float32) * 0.1

    # Weight prep is hoisted out of the per-call path (done once at init).
    params = prepare_conv_block_down_params(w1, b1, w2, b2, W)
    fwd = jax.jit(conv_block_down)

    skip, pooled = fwd(x, params)
    jax.block_until_ready((skip, pooled))

    skip_ref, pooled_ref = _reference(x, w1, b1, w2, b2)
    assert skip.shape == (N, Cout, H, W)
    assert pooled.shape == (N, Cout, H // 2, W // 2)
    # bf16 MXU inputs -> compare against a reference with matching rounding.
    assert jnp.allclose(skip, skip_ref, atol=5e-3, rtol=5e-3), "skip mismatch"
    assert jnp.allclose(pooled, pooled_ref, atol=5e-3, rtol=5e-3), "pooled mismatch"

    print("KERNEL_OK")
</pallas_src>

<mosaic_0001>
module attributes {stable_mosaic.version = 11 : i64} {
  func.func @_conv_block_down_kernel(%arg0: i32, %arg1: memref<32x192xbf16, #tpu.memory_space<vmem>>, %arg2: memref<192x128xbf16, #tpu.memory_space<vmem>>, %arg3: memref<1x128xf32, #tpu.memory_space<vmem>>, %arg4: memref<384x128xbf16, #tpu.memory_space<vmem>>, %arg5: memref<1x128xf32, #tpu.memory_space<vmem>>, %arg6: memref<32x128xf32, #tpu.memory_space<vmem>>, %arg7: memref<16x128xf32, #tpu.memory_space<vmem>>) attributes {dimension_semantics = [#tpu.dimension_semantics<parallel>], iteration_bounds = array<i64: 1>, scalar_prefetch = 0 : i64, scratch_operands = 0 : i64, tpu.core_type = #tpu.core_type<tc>, window_params = [{transform_indices = @transform_0, window_bounds = array<i64: 32, 192>}, {pipeline_mode = #tpu.pipeline_mode<synchronous>, transform_indices = @transform_1, window_bounds = array<i64: 192, 128>}, {pipeline_mode = #tpu.pipeline_mode<synchronous>, transform_indices = @transform_2, window_bounds = array<i64: 1, 128>}, {pipeline_mode = #tpu.pipeline_mode<synchronous>, transform_indices = @transform_3, window_bounds = array<i64: 384, 128>}, {pipeline_mode = #tpu.pipeline_mode<synchronous>, transform_indices = @transform_4, window_bounds = array<i64: 1, 128>}, {transform_indices = @transform_5, window_bounds = array<i64: 32, 128>}, {transform_indices = @transform_6, window_bounds = array<i64: 16, 128>}]} {
    %c0 = arith.constant 0 : index
    %c0_0 = arith.constant 0 : index
    %0 = vector.load %arg1[%c0, %c0_0] : memref<32x192xbf16, #tpu.memory_space<vmem>>, vector<32x192xbf16>
    %c0_1 = arith.constant 0 : index
    %c0_2 = arith.constant 0 : index
    %1 = vector.load %arg2[%c0_1, %c0_2] : memref<192x128xbf16, #tpu.memory_space<vmem>>, vector<192x128xbf16>
    %cst = arith.constant dense<0.000000e+00> : vector<32x128xf32>
    %2 = tpu.matmul %0, %1, %cst {dimension_numbers = #tpu.dot_dimension_numbers<[1], [0], [0], [1], [0, 0, 1, 1], [], []>} : vector<32x192xbf16>, vector<192x128xbf16>, vector<32x128xf32> -> vector<32x128xf32>
    %c0_3 = arith.constant 0 : index
    %c0_4 = arith.constant 0 : index
    %3 = vector.load %arg3[%c0_3, %c0_4] : memref<1x128xf32, #tpu.memory_space<vmem>>, vector<1x128xf32>
    %4 = vector.broadcast %3 : vector<1x128xf32> to vector<32x128xf32>
    %5 = arith.addf %2, %4 : vector<32x128xf32>
    %cst_5 = arith.constant 0.000000e+00 : f32
    %6 = vector.broadcast %cst_5 : f32 to vector<32x128xf32>
    %7 = arith.maximumf %5, %6 : vector<32x128xf32>
    %8 = tpu.iota {dimensions = array<i32: 0>} : vector<32x128xi32>
    %c16_i32 = arith.constant 16 : i32
    %c0_i32 = arith.constant 0 : i32
    %9 = arith.cmpi eq, %c16_i32, %c0_i32 : i32
    %c1_i32 = arith.constant 1 : i32
    %10 = arith.select %9, %c1_i32, %c16_i32 : i32
    %11 = vector.broadcast %10 : i32 to vector<32x128xi32>
    %12 = arith.remsi %8, %11 : vector<32x128xi32>
    %c0_i32_6 = arith.constant 0 : i32
    %13 = vector.broadcast %c0_i32_6 : i32 to vector<32x128xi32>
    %14 = arith.cmpi ne, %12, %13 : vector<32x128xi32>
    %c0_i32_7 = arith.constant 0 : i32
    %15 = vector.broadcast %c0_i32_7 : i32 to vector<32x128xi32>
    %16 = arith.cmpi slt, %12, %15 : vector<32x128xi32>
    %c0_i32_8 = arith.constant 0 : i32
    %17 = arith.cmpi slt, %10, %c0_i32_8 : i32
    %18 = vector.broadcast %17 : i1 to vector<32x128xi1>
    %19 = vector.broadcast %18 : vector<32x128xi1> to vector<32x128xi1>
    %20 = arith.xori %16, %19 : vector<32x128xi1>
    %21 = arith.andi %20, %14 : vector<32x128xi1>
    %22 = vector.broadcast %10 : i32 to vector<32x128xi32>
    %23 = arith.addi %12, %22 : vector<32x128xi32>
    %24 = arith.select %21, %23, %12 : vector<32x128xi1>, vector<32x128xi32>
    %cst_9 = arith.constant 0.000000e+00 : f32
    %25 = vector.broadcast %cst_9 : f32 to vector<1x128xf32>
    %26 = tpu.concatenate %25, %7, %25 in 0 : vector<1x128xf32>, vector<32x128xf32>, vector<1x128xf32> -> vector<34x128xf32>
    %c0_i32_10 = arith.constant 0 : i32
    %27 = vector.broadcast %c0_i32_10 : i32 to vector<32x128xi32>
    %28 = arith.cmpi eq, %24, %27 : vector<32x128xi32>
    %29 = vector.extract_strided_slice %26 {offsets = [0, 0], sizes = [32, 128], strides = [1, 1]} : vector<34x128xf32> to vector<32x128xf32>
    %cst_11 = arith.constant 0.000000e+00 : f32
    %30 = vector.broadcast %cst_11 : f32 to vector<32x128xf32>
    %31 = arith.select %28, %30, %29 : vector<32x128xi1>, vector<32x128xf32>
    %c15_i32 = arith.constant 15 : i32
    %32 = vector.broadcast %c15_i32 : i32 to vector<32x128xi32>
    %33 = arith.cmpi eq, %24, %32 : vector<32x128xi32>
    %34 = vector.extract_strided_slice %26 {offsets = [2, 0], sizes = [32, 128], strides = [1, 1]} : vector<34x128xf32> to vector<32x128xf32>
    %cst_12 = arith.constant 0.000000e+00 : f32
    %35 = vector.broadcast %cst_12 : f32 to vector<32x128xf32>
    %36 = arith.select %33, %35, %34 : vector<32x128xi1>, vector<32x128xf32>
    %37 = tpu.concatenate %31, %7, %36 in 1 : vector<32x128xf32>, vector<32x128xf32>, vector<32x128xf32> -> vector<32x384xf32>
    %38 = arith.truncf %37 : vector<32x384xf32> to vector<32x384xbf16>
    %c0_13 = arith.constant 0 : index
    %c0_14 = arith.constant 0 : index
    %39 = vector.load %arg4[%c0_13, %c0_14] : memref<384x128xbf16, #tpu.memory_space<vmem>>, vector<384x128xbf16>
    %cst_15 = arith.constant dense<0.000000e+00> : vector<32x128xf32>
    %40 = tpu.matmul %38, %39, %cst_15 {dimension_numbers = #tpu.dot_dimension_numbers<[1], [0], [0], [1], [0, 0, 1, 1], [], []>} : vector<32x384xbf16>, vector<384x128xbf16>, vector<32x128xf32> -> vector<32x128xf32>
    %c0_16 = arith.constant 0 : index
    %c0_17 = arith.constant 0 : index
    %41 = vector.load %arg5[%c0_16, %c0_17] : memref<1x128xf32, #tpu.memory_space<vmem>>, vector<1x128xf32>
    %42 = vector.broadcast %41 : vector<1x128xf32> to vector<32x128xf32>
    %43 = arith.addf %40, %42 : vector<32x128xf32>
    %cst_18 = arith.constant 0.000000e+00 : f32
    %44 = vector.broadcast %cst_18 : f32 to vector<32x128xf32>
    %45 = arith.maximumf %43, %44 : vector<32x128xf32>
    %c0_19 = arith.constant 0 : index
    %c0_20 = arith.constant 0 : index
    %46 = vector.load %arg6[%c0_19, %c0_20] : memref<32x128xf32, #tpu.memory_space<vmem>>, vector<32x128xf32>
    tpu.vector_store %arg6[%c0_19, %c0_20], %45 {strides = array<i32>} : memref<32x128xf32, #tpu.memory_space<vmem>>, vector<32x128xf32>,
    %47 = vector.shape_cast %45 : vector<32x128xf32> to vector<16x2x128xf32>
    %cst_21 = arith.constant dense<0xFF800000> : vector<16x128xf32>
    %48 = vector.multi_reduction <maximumf>, %47, %cst_21 [1] : vector<16x2x128xf32> to vector<16x128xf32>
    %c120_i32 = arith.constant 120 : i32
    %49 = tpu.dynamic_rotate %48 by %c120_i32 dim 1 : vector<16x128xf32>, i32 -> vector<16x128xf32>
    %50 = arith.maximumf %48, %49 : vector<16x128xf32>
    %c0_22 = arith.constant 0 : index
    %c0_23 = arith.constant 0 : index
    %51 = vector.load %arg7[%c0_22, %c0_23] : memref<16x128xf32, #tpu.memory_space<vmem>>, vector<16x128xf32>
    tpu.vector_store %arg7[%c0_22, %c0_23], %50 {strides = array<i32>} : memref<16x128xf32, #tpu.memory_space<vmem>>, vector<16x128xf32>,
    return
  }
  func.func @transform_0(%arg0: i32) -> (i32, i32) {
    %c0_i32 = arith.constant 0 : i32
    %c0_i32_0 = arith.constant 0 : i32
    return %arg0, %c0_i32 : i32, i32
  }
  func.func @transform_1(%arg0: i32) -> (i32, i32) {
    %c0_i32 = arith.constant 0 : i32
    %c0_i32_0 = arith.constant 0 : i32
    %c0_i32_1 = arith.constant 0 : i32
    return %c0_i32, %c0_i32_0 : i32, i32
  }
  func.func @transform_2(%arg0: i32) -> (i32, i32) {
    %c0_i32 = arith.constant 0 : i32
    %c0_i32_0 = arith.constant 0 : i32
    %c0_i32_1 = arith.constant 0 : i32
    return %c0_i32, %c0_i32_0 : i32, i32
  }
  func.func @transform_3(%arg0: i32) -> (i32, i32) {
    %c0_i32 = arith.constant 0 : i32
    %c0_i32_0 = arith.constant 0 : i32
    %c0_i32_1 = arith.constant 0 : i32
    return %c0_i32, %c0_i32_0 : i32, i32
  }
  func.func @transform_4(%arg0: i32) -> (i32, i32) {
    %c0_i32 = arith.constant 0 : i32
    %c0_i32_0 = arith.constant 0 : i32
    %c0_i32_1 = arith.constant 0 : i32
    return %c0_i32, %c0_i32_0 : i32, i32
  }
  func.func @transform_5(%arg0: i32) -> (i32, i32) {
    %c0_i32 = arith.constant 0 : i32
    %c0_i32_0 = arith.constant 0 : i32
    return %arg0, %c0_i32 : i32, i32
  }
  func.func @transform_6(%arg0: i32) -> (i32, i32) {
    %c0_i32 = arith.constant 0 : i32
    %c0_i32_0 = arith.constant 0 : i32
    return %arg0, %c0_i32 : i32, i32
  }
}

</mosaic_0001>

<llo_original>
// kernel: conv_block_down.1
$region0: #{conv_block_down.1}
  #allocation0 [shape = 'u32[]', space=smem, size = 0x4, offset = 0x4, fixed_abs, tag = 'smem constant byte address 0x4 - core index']
  #allocation1 [shape = 'u32[144,128]{1,0:T(1,128)}', space=vmem, size = 0x12000, scoped, tag = 'internal scratch']
  %s0 = inlined_call_operand.vmem [shape: bf16[32,192], index: 0, kind: input, shape index: {}]
  %s1 = inlined_call_operand.vmem [shape: bf16[192,128], index: 1, kind: input, shape index: {}]
  %s2 = inlined_call_operand.vmem [shape: f32[1,128], index: 2, kind: input, shape index: {}]
  %s3 = inlined_call_operand.vmem [shape: bf16[384,128], index: 3, kind: input, shape index: {}]
  %s4 = inlined_call_operand.vmem [shape: f32[1,128], index: 4, kind: input, shape index: {}]
  %s5 = inlined_call_operand.vmem [shape: f32[32,128], index: 5, kind: output, shape index: {0}]
  %s6 = inlined_call_operand.vmem [shape: f32[16,128], index: 6, kind: output, shape index: {1}]
  %7 = xla_tuple %s5, %s6
  %s8 = sld [smem:[#allocation0]]
  $region38: #{conv_block_down.1} parent=0
    _
  %s10 = ssub.s32 1, %s8
  %s11 = scalar_select 0, %s10, %s8
  // Predicated region
  $region2: #{conv_block_down.1} parent=0 // pred_check
    _
  $region3: #{conv_block_down.1} parent=0 // pred_check_branch
    %13 = sbr.rel (0) target = $region5
  $region4: #{conv_block_down.1} parent=0 // pred_region
    _
  $region5: #{conv_block_down.1} parent=0 // pred_fallthru
    _
  // Predicated region
  $region6: #{conv_block_down.1} parent=0 // pred_check
    _
  $region7: #{conv_block_down.1} parent=0 // pred_check_branch
    %15 = sbr.rel (0) target = $region9
  $region8: #{conv_block_down.1} parent=0 // pred_region
    _
  $region9: #{conv_block_down.1} parent=0 // pred_fallthru
    _
  // Predicated region
  $region10: #{conv_block_down.1} parent=0 // pred_check
    _
  $region11: #{conv_block_down.1} parent=0 // pred_check_branch
    %17 = sbr.rel (0) target = $region13
  $region12: #{conv_block_down.1} parent=0 // pred_region
    _
  $region13: #{conv_block_down.1} parent=0 // pred_fallthru
    _
  // Predicated region
  $region14: #{conv_block_down.1} parent=0 // pred_check
    _
  $region15: #{conv_block_down.1} parent=0 // pred_check_branch
    %19 = sbr.rel (0) target = $region17
  $region16: #{conv_block_down.1} parent=0 // pred_region
    _
  $region17: #{conv_block_down.1} parent=0 // pred_fallthru
    _
  // Predicated region
  $region18: #{conv_block_down.1} parent=0 // pred_check
    _
  $region19: #{conv_block_down.1} parent=0 // pred_check_branch
    %21 = sbr.rel (0) target = $region21
  $region20: #{conv_block_down.1} parent=0 // pred_region
    _
  $region21: #{conv_block_down.1} parent=0 // pred_fallthru
    _
  %v23 = vld [vmem:[%s0] sm:$0xff]
  %v24 = vld [vmem:[%s0 + $0x8] sm:$0xff]
  %v25 = vld [vmem:[%s0 + $0x10] sm:$0xff]
  %v26 = vld [vmem:[%s0 + $0x18] sm:$0xff]
  %v27 = vld [vmem:[%s1] sm:$0xf]
  %v28 = vld [vmem:[%s1 + $0x4] sm:$0xf]
  %v29 = vld [vmem:[%s1 + $0x8] sm:$0xf]
  %v30 = vld [vmem:[%s1 + $0xc] sm:$0xf]
  %v31 = vld [vmem:[%s1 + $0x10] sm:$0xf]
  %v32 = vld [vmem:[%s1 + $0x14] sm:$0xf]
  %v33 = vld [vmem:[%s1 + $0x18] sm:$0xf]
  %v34 = vld [vmem:[%s1 + $0x1c] sm:$0xf]
  %v35 = vld [vmem:[%s1 + $0x20] sm:$0xf]
  %v36 = vld [vmem:[%s1 + $0x24] sm:$0xf]
  %v37 = vld [vmem:[%s1 + $0x28] sm:$0xf]
  %v38 = vld [vmem:[%s1 + $0x2c] sm:$0xf]
  %v39 = vld [vmem:[%s1 + $0x30] sm:$0xf]
  %v40 = vld [vmem:[%s1 + $0x34] sm:$0xf]
  %v41 = vld [vmem:[%s1 + $0x38] sm:$0xf]
  %v42 = vld [vmem:[%s1 + $0x3c] sm:$0xf]
  %v43 = vld [vmem:[%s1 + $0x40] sm:$0xf]
  %v44 = vld [vmem:[%s1 + $0x44] sm:$0xf]
  %v45 = vld [vmem:[%s1 + $0x48] sm:$0xf]
  %v46 = vld [vmem:[%s1 + $0x4c] sm:$0xf]
  %v47 = vld [vmem:[%s1 + $0x50] sm:$0xf]
  %v48 = vld [vmem:[%s1 + $0x54] sm:$0xf]
  %v49 = vld [vmem:[%s1 + $0x58] sm:$0xf]
  %v50 = vld [vmem:[%s1 + $0x5c] sm:$0xf]
  %v51 = vld [vmem:[%s2] sm:$0x1]
  %v53 = vlaneseq
  %v54 = vshrl.u32 %v53, 7
  %v55 = vsub.s32 0, %v54
  %v56 = vrot.slane %v51, %v55
  %v62 = vunpack.c.l.b16 %v23
  %v63 = vunpack.c.h.b16 %v23
  %v64 = vunpack.c.l.b16 %v24
  %v65 = vunpack.c.h.b16 %v24
  %v66 = vunpack.c.l.b16 %v25
  %v67 = vunpack.c.h.b16 %v25
  %v68 = vunpack.c.l.b16 %v26
  %v69 = vunpack.c.h.b16 %v26
  %v70 = vpack.c.b16 %v64, %v62
  %v71 = vpack.c.b16 %v65, %v63
  %v72 = vpack.c.b16 %v68, %v66
  %v73 = vpack.c.b16 %v69, %v67
  %v100 = vunpack.c.l.b16 %v27
  %v101 = vunpack.c.l.b16 %v28
  %v102 = vunpack.c.l.b16 %v29
  %v103 = vunpack.c.l.b16 %v30
  %v104 = vunpack.c.l.b16 %v31
  %v105 = vunpack.c.l.b16 %v32
  %v106 = vunpack.c.l.b16 %v33
  %v107 = vunpack.c.l.b16 %v34
  %v108 = vunpack.c.l.b16 %v35
  %v109 = vunpack.c.l.b16 %v36
  %v110 = vunpack.c.l.b16 %v37
  %v111 = vunpack.c.l.b16 %v38
  %v112 = vunpack.c.l.b16 %v39
  %v113 = vunpack.c.l.b16 %v40
  %v114 = vunpack.c.l.b16 %v41
  %v115 = vunpack.c.l.b16 %v42
  %v116 = vunpack.c.l.b16 %v43
  %v117 = vunpack.c.l.b16 %v44
  %v118 = vunpack.c.l.b16 %v45
  %v119 = vunpack.c.l.b16 %v46
  %v120 = vunpack.c.l.b16 %v47
  %v121 = vunpack.c.l.b16 %v48
  %v122 = vunpack.c.l.b16 %v49
  %v123 = vunpack.c.l.b16 %v50
  %v124 = vpack.c.b16 %v101, %v100
  %v125 = vpack.c.b16 %v103, %v102
  %v126 = vpack.c.b16 %v105, %v104
  %v127 = vpack.c.b16 %v107, %v106
  %v128 = vpack.c.b16 %v109, %v108
  %v129 = vpack.c.b16 %v111, %v110
  %v130 = vpack.c.b16 %v113, %v112
  %v131 = vpack.c.b16 %v115, %v114
  %v132 = vpack.c.b16 %v117, %v116
  %v133 = vpack.c.b16 %v119, %v118
  %v134 = vpack.c.b16 %v121, %v120
  %v135 = vpack.c.b16 %v123, %v122
  %vm148 = vcmask 523264
  %v150 = vsel %vm148, %v71, 0
  %v153 = vsel %vm148, %v73, 0
  %155 = vmatprep.subr.bf16.mxu0 0
  %156 = vmatpush1.bf16.msra.mxu0 %v124
  %157 = vmatprep.subr.bf16.mxu0 0
  %158 = vmatpush1.bf16.msra.mxu0 %v125
  %159 = vmatprep.subr.bf16.mxu0 0
  %160 = vmatpush1.bf16.msra.mxu0 %v126
  %161 = vmatprep.subr.bf16.mxu0 0
  %162 = vmatpush1.bf16.msra.mxu0 %v127
  %163 = vmatprep.subr.bf16.mxu0 0
  %164 = vmatpush1.bf16.msra.mxu0 %v128
  %165 = vmatprep.subr.bf16.mxu0 0
  %166 = vmatpush1.bf16.msra.mxu0 %v129
  %167 = vmatprep.subr.bf16.mxu0 0
  %168 = vmatpush1.bf16.msra.mxu0 %v130
  %169 = vmatprep.subr.bf16.mxu0 0
  %170 = vmatpush1.bf16.msra.mxu0 %v131
  %171 = vmatprep.subr.bf16.mxu0 0
  %172 = vmatpush1.bf16.msra.mxu0 %v132
  %173 = vmatprep.subr.bf16.mxu0 0
  %174 = vmatpush1.bf16.msra.mxu0 %v133
  %175 = vmatprep.subr.bf16.mxu0 0
  %176 = vmatpush1.bf16.msra.mxu0 %v134
  %177 = vmatprep.subr.bf16.mxu0 0
  %178 = vmatpush1.bf16.msra.mxu0 %v135
  %179 = vmatprep.subr.bf16.mxu0 0
  %180 = vmatpush1.bf16.msra.mxu0 0
  %181 = vmatprep.subr.bf16.mxu0 0
  %182 = vmatpush1.bf16.msra.mxu0 0
  %183 = vmatprep.subr.bf16.mxu0 0
  %184 = vmatpush1.bf16.msra.mxu0 0
  %185 = vmatprep.subr.bf16.mxu0 0
  %186 = vmatpush1.bf16.msra.mxu0 0
  %187 = vmatprep.mubr.bf16.mxu0 %v150
  %188 = vmatmul.mubr.bf16.gmra.mrb[0].mxu0 %v70
  %v189 = vpop.f32.mrb[0].mxu0
  %v190 = vadd.f32 %v56, %v189
  %v191 = vpop.f32.mrb[0].mxu0
  %v192 = vpop.f32.mrb[0].mxu0
  %v193 = vadd.f32 %v56, %v192
  %v194 = vpop.f32.mrb[0].mxu0
  %195 = vmatprep.mubr.bf16.mxu0 %v153
  %196 = vmatmul.mubr.bf16.gmra.mrb[0].mxu0 %v72
  %v197 = vpop.f32.mrb[0].mxu0
  %v198 = vadd.f32 %v56, %v197
  %v199 = vpop.f32.mrb[0].mxu0
  %v200 = vpop.f32.mrb[0].mxu0
  %v201 = vadd.f32 %v56, %v200
  %v202 = vpop.f32.mrb[0].mxu0
  %203 = vdwg.mxu0
  %v204 = vmax.f32 %v190, 0.0
  %v205 = vmax.f32 %v193, 0.0
  %v206 = vmax.f32 %v198, 0.0
  %v207 = vmax.f32 %v201, 0.0
  %v208 = vlaneseq
  %v209 = vshrl.u32 %v208, 7
  %v210 = vadd.s32 %v209, 8
  %v211 = vadd.s32 %v209, 16
  %v212 = vadd.s32 %v209, 24
  %vm213 = vcmp.lt.s32.totalorder %v209, 0
  %v214 = vsub.s32 0, %v209
  %v215 = vsel %vm213, %v214, %v209
  %v216 = vshrl.u32 %v215, 4
  %v217 = vand.u32 %v215, 15
  %v218 = vsub.s32 0, %v217
  %v219 = vsel %vm213, %v218, %v217
  %vm220 = vcmp.lt.s32.totalorder %v210, 0
  %v221 = vsub.s32 0, %v210
  %v222 = vsel %vm220, %v221, %v210
  %v223 = vshrl.u32 %v222, 4
  %v224 = vand.u32 %v222, 15
  %v225 = vsub.s32 0, %v224
  %v226 = vsel %vm220, %v225, %v224
  %vm227 = vcmp.lt.s32.totalorder %v211, 0
  %v228 = vsub.s32 0, %v211
  %v229 = vsel %vm227, %v228, %v211
  %v230 = vshrl.u32 %v229, 4
  %v231 = vand.u32 %v229, 15
  %v232 = vsub.s32 0, %v231
  %v233 = vsel %vm227, %v232, %v231
  %vm234 = vcmp.lt.s32.totalorder %v212, 0
  %v235 = vsub.s32 0, %v212
  %v236 = vsel %vm234, %v235, %v212
  %v237 = vshrl.u32 %v236, 4
  %v238 = vand.u32 %v236, 15
  %v239 = vsub.s32 0, %v238
  %v240 = vsel %vm234, %v239, %v238
  %vm241 = vcmp.ne.s32.totalorder %v219, 0
  %vm242 = vcmp.ne.s32.totalorder %v226, 0
  %vm243 = vcmp.ne.s32.totalorder %v233, 0
  %vm244 = vcmp.ne.s32.totalorder %v240, 0
  %vm245 = vcmp.lt.s32.totalorder %v219, 0
  %vm246 = vcmp.lt.s32.totalorder %v226, 0
  %vm247 = vcmp.lt.s32.totalorder %v233, 0
  %vm248 = vcmp.lt.s32.totalorder %v240, 0
  %vm249 = vmand %vm245, %vm241
  %vm250 = vmand %vm246, %vm242
  %vm251 = vmand %vm247, %vm243
  %vm252 = vmand %vm248, %vm244
  %v253 = vadd.s32 %v219, 16
  %v254 = vadd.s32 %v226, 16
  %v255 = vadd.s32 %v233, 16
  %v256 = vadd.s32 %v240, 16
  %v257 = vsel %vm249, %v253, %v219
  %v258 = vsel %vm250, %v254, %v226
  %v259 = vsel %vm251, %v255, %v233
  %v260 = vsel %vm252, %v256, %v240
  %vm265 = vcmask 1040384
  %v266 = vrot.slane %v204, 7
  %v267 = vrot.slane %v205, 7
  %v268 = vsel %vm265, %v266, %v267
  %v269 = vrot.slane %v206, 7
  %v270 = vsel %vm265, %v267, %v269
  %v271 = vrot.slane %v207, 7
  %v272 = vsel %vm265, %v269, %v271
  %v278 = vsel %vm265, 0.0, %v266
  %v279 = vsel %vm265, %v271, 0.0
  %vm280 = vcmp.eq.s32.totalorder %v257, 0
  %vm281 = vcmp.eq.s32.totalorder %v258, 0
  %vm282 = vcmp.eq.s32.totalorder %v259, 0
  %vm283 = vcmp.eq.s32.totalorder %v260, 0
  %v284 = vsel %vm280, 0.0, %v278
  %v285 = vsel %vm281, 0.0, %v268
  %v286 = vsel %vm282, 0.0, %v270
  %v287 = vsel %vm283, 0.0, %v272
  %vm288 = vcmp.eq.s32.totalorder %v257, 15
  %vm289 = vcmp.eq.s32.totalorder %v258, 15
  %vm290 = vcmp.eq.s32.totalorder %v259, 15
  %vm291 = vcmp.eq.s32.totalorder %v260, 15
  %vm294 = vcmask 1045504
  %v295 = vrot.slane %v278, 2
  %v296 = vrot.slane %v268, 2
  %v297 = vsel %vm294, %v295, %v296
  %v298 = vrot.slane %v270, 2
  %v299 = vsel %vm294, %v296, %v298
  %v300 = vrot.slane %v272, 2
  %v301 = vsel %vm294, %v298, %v300
  %v302 = vrot.slane %v279, 2
  %v303 = vsel %vm294, %v300, %v302
  %v308 = vsel %vm288, 0.0, %v297
  %v309 = vsel %vm289, 0.0, %v299
  %v310 = vsel %vm290, 0.0, %v301
  %v311 = vsel %vm291, 0.0, %v303
  %v312 = vpack.c.bf16 %v285, %v284
  %v313 = vpack.c.bf16 %v205, %v204
  %v314 = vpack.c.bf16 %v309, %v308
  %v315 = vpack.c.bf16 %v287, %v286
  %v316 = vpack.c.bf16 %v207, %v206
  %v317 = vpack.c.bf16 %v311, %v310
  %v318 = vld [vmem:[%s3] sm:$0xf]
  %v319 = vld [vmem:[%s3 + $0x4] sm:$0xf]
  %v320 = vld [vmem:[%s3 + $0x8] sm:$0xf]
  %v321 = vld [vmem:[%s3 + $0xc] sm:$0xf]
  %v322 = vld [vmem:[%s3 + $0x10] sm:$0xf]
  %v323 = vld [vmem:[%s3 + $0x14] sm:$0xf]
  %v324 = vld [vmem:[%s3 + $0x18] sm:$0xf]
  %v325 = vld [vmem:[%s3 + $0x1c] sm:$0xf]
  %v326 = vld [vmem:[%s3 + $0x20] sm:$0xf]
  %v327 = vld [vmem:[%s3 + $0x24] sm:$0xf]
  %v328 = vld [vmem:[%s3 + $0x28] sm:$0xf]
  %v329 = vld [vmem:[%s3 + $0x2c] sm:$0xf]
  %v330 = vld [vmem:[%s3 + $0x30] sm:$0xf]
  %v331 = vld [vmem:[%s3 + $0x34] sm:$0xf]
  %v332 = vld [vmem:[%s3 + $0x38] sm:$0xf]
  %v333 = vld [vmem:[%s3 + $0x3c] sm:$0xf]
  %v334 = vld [vmem:[%s3 + $0x40] sm:$0xf]
  %v335 = vld [vmem:[%s3 + $0x44] sm:$0xf]
  %v336 = vld [vmem:[%s3 + $0x48] sm:$0xf]
  %v337 = vld [vmem:[%s3 + $0x4c] sm:$0xf]
  %v338 = vld [vmem:[%s3 + $0x50] sm:$0xf]
  %v339 = vld [vmem:[%s3 + $0x54] sm:$0xf]
  %v340 = vld [vmem:[%s3 + $0x58] sm:$0xf]
  %v341 = vld [vmem:[%s3 + $0x5c] sm:$0xf]
  %v342 = vld [vmem:[%s3 + $0x60] sm:$0xf]
  %v343 = vld [vmem:[%s3 + $0x64] sm:$0xf]
  %v344 = vld [vmem:[%s3 + $0x68] sm:$0xf]
  %v345 = vld [vmem:[%s3 + $0x6c] sm:$0xf]
  %v346 = vld [vmem:[%s3 + $0x70] sm:$0xf]
  %v347 = vld [vmem:[%s3 + $0x74] sm:$0xf]
  %v348 = vld [vmem:[%s3 + $0x78] sm:$0xf]
  %v349 = vld [vmem:[%s3 + $0x7c] sm:$0xf]
  %v350 = vld [vmem:[%s3 + $0x80] sm:$0xf]
  %v351 = vld [vmem:[%s3 + $0x84] sm:$0xf]
  %v352 = vld [vmem:[%s3 + $0x88] sm:$0xf]
  %v353 = vld [vmem:[%s3 + $0x8c] sm:$0xf]
  %v354 = vld [vmem:[%s3 + $0x90] sm:$0xf]
  %v355 = vld [vmem:[%s3 + $0x94] sm:$0xf]
  %v356 = vld [vmem:[%s3 + $0x98] sm:$0xf]
  %v357 = vld [vmem:[%s3 + $0x9c] sm:$0xf]
  %v358 = vld [vmem:[%s3 + $0xa0] sm:$0xf]
  %v359 = vld [vmem:[%s3 + $0xa4] sm:$0xf]
  %v360 = vld [vmem:[%s3 + $0xa8] sm:$0xf]
  %v361 = vld [vmem:[%s3 + $0xac] sm:$0xf]
  %v362 = vld [vmem:[%s3 + $0xb0] sm:$0xf]
  %v363 = vld [vmem:[%s3 + $0xb4] sm:$0xf]
  %v364 = vld [vmem:[%s3 + $0xb8] sm:$0xf]
  %v365 = vld [vmem:[%s3 + $0xbc] sm:$0xf]
  %v366 = vld [vmem:[%s4] sm:$0x1]
  %v368 = vlaneseq
  %v369 = vshrl.u32 %v368, 7
  %v370 = vsub.s32 0, %v369
  %v371 = vrot.slane %v366, %v370
  %v421 = vunpack.c.l.b16 %v318
  %v422 = vunpack.c.l.b16 %v319
  %v423 = vunpack.c.l.b16 %v320
  %v424 = vunpack.c.l.b16 %v321
  %v425 = vunpack.c.l.b16 %v322
  %v426 = vunpack.c.l.b16 %v323
  %v427 = vunpack.c.l.b16 %v324
  %v428 = vunpack.c.l.b16 %v325
  %v429 = vunpack.c.l.b16 %v326
  %v430 = vunpack.c.l.b16 %v327
  %v431 = vunpack.c.l.b16 %v328
  %v432 = vunpack.c.l.b16 %v329
  %v433 = vunpack.c.l.b16 %v330
  %v434 = vunpack.c.l.b16 %v331
  %v435 = vunpack.c.l.b16 %v332
  %v436 = vunpack.c.l.b16 %v333
  %v437 = vunpack.c.l.b16 %v334
  %v438 = vunpack.c.l.b16 %v335
  %v439 = vunpack.c.l.b16 %v336
  %v440 = vunpack.c.l.b16 %v337
  %v441 = vunpack.c.l.b16 %v338
  %v442 = vunpack.c.l.b16 %v339
  %v443 = vunpack.c.l.b16 %v340
  %v444 = vunpack.c.l.b16 %v341
  %v445 = vunpack.c.l.b16 %v342
  %v446 = vunpack.c.l.b16 %v343
  %v447 = vunpack.c.l.b16 %v344
  %v448 = vunpack.c.l.b16 %v345
  %v449 = vunpack.c.l.b16 %v346
  %v450 = vunpack.c.l.b16 %v347
  %v451 = vunpack.c.l.b16 %v348
  %v452 = vunpack.c.l.b16 %v349
  %v453 = vunpack.c.l.b16 %v350
  %v454 = vunpack.c.l.b16 %v351
  %v455 = vunpack.c.l.b16 %v352
  %v456 = vunpack.c.l.b16 %v353
  %v457 = vunpack.c.l.b16 %v354
  %v458 = vunpack.c.l.b16 %v355
  %v459 = vunpack.c.l.b16 %v356
  %v460 = vunpack.c.l.b16 %v357
  %v461 = vunpack.c.l.b16 %v358
  %v462 = vunpack.c.l.b16 %v359
  %v463 = vunpack.c.l.b16 %v360
  %v464 = vunpack.c.l.b16 %v361
  %v465 = vunpack.c.l.b16 %v362
  %v466 = vunpack.c.l.b16 %v363
  %v467 = vunpack.c.l.b16 %v364
  %v468 = vunpack.c.l.b16 %v365
  %v469 = vpack.c.b16 %v422, %v421
  %v470 = vpack.c.b16 %v424, %v423
  %v471 = vpack.c.b16 %v426, %v425
  %v472 = vpack.c.b16 %v428, %v427
  %v473 = vpack.c.b16 %v430, %v429
  %v474 = vpack.c.b16 %v432, %v431
  %v475 = vpack.c.b16 %v434, %v433
  %v476 = vpack.c.b16 %v436, %v435
  %v477 = vpack.c.b16 %v438, %v437
  %v478 = vpack.c.b16 %v440, %v439
  %v479 = vpack.c.b16 %v442, %v441
  %v480 = vpack.c.b16 %v444, %v443
  %v481 = vpack.c.b16 %v446, %v445
  %v482 = vpack.c.b16 %v448, %v447
  %v483 = vpack.c.b16 %v450, %v449
  %v484 = vpack.c.b16 %v452, %v451
  %v485 = vpack.c.b16 %v454, %v453
  %v486 = vpack.c.b16 %v456, %v455
  %v487 = vpack.c.b16 %v458, %v457
  %v488 = vpack.c.b16 %v460, %v459
  %v489 = vpack.c.b16 %v462, %v461
  %v490 = vpack.c.b16 %v464, %v463
  %v491 = vpack.c.b16 %v466, %v465
  %v492 = vpack.c.b16 %v468, %v467
  %517 = vmatprep.subr.bf16.mxu0 0
  %518 = vmatpush1.bf16.msra.mxu0 %v469
  %519 = vmatprep.subr.bf16.mxu0 0
  %520 = vmatpush1.bf16.msra.mxu0 %v470
  %521 = vmatprep.subr.bf16.mxu0 0
  %522 = vmatpush1.bf16.msra.mxu0 %v471
  %523 = vmatprep.subr.bf16.mxu0 0
  %524 = vmatpush1.bf16.msra.mxu0 %v472
  %525 = vmatprep.subr.bf16.mxu0 0
  %526 = vmatpush1.bf16.msra.mxu0 %v473
  %527 = vmatprep.subr.bf16.mxu0 0
  %528 = vmatpush1.bf16.msra.mxu0 %v474
  %529 = vmatprep.subr.bf16.mxu0 0
  %530 = vmatpush1.bf16.msra.mxu0 %v475
  %531 = vmatprep.subr.bf16.mxu0 0
  %532 = vmatpush1.bf16.msra.mxu0 %v476
  %533 = vmatprep.subr.bf16.mxu0 0
  %534 = vmatpush1.bf16.msra.mxu0 %v477
  %535 = vmatprep.subr.bf16.mxu0 0
  %536 = vmatpush1.bf16.msra.mxu0 %v478
  %537 = vmatprep.subr.bf16.mxu0 0
  %538 = vmatpush1.bf16.msra.mxu0 %v479
  %539 = vmatprep.subr.bf16.mxu0 0
  %540 = vmatpush1.bf16.msra.mxu0 %v480
  %541 = vmatprep.subr.bf16.mxu0 0
  %542 = vmatpush1.bf16.msra.mxu0 %v481
  %543 = vmatprep.subr.bf16.mxu0 0
  %544 = vmatpush1.bf16.msra.mxu0 %v482
  %545 = vmatprep.subr.bf16.mxu0 0
  %546 = vmatpush1.bf16.msra.mxu0 %v483
  %547 = vmatprep.subr.bf16.mxu0 0
  %548 = vmatpush1.bf16.msra.mxu0 %v484
  %549 = vmatprep.mubr.bf16.mxu0 %v313
  %550 = vmatmul.mubr.bf16.gmra.mrb[0].mxu0 %v312
  %v551 = vpop.f32.mrb[0].mxu0
  %v552 = vadd.f32 %v371, %v551
  %v553 = vpop.f32.mrb[0].mxu0
  %v554 = vpop.f32.mrb[0].mxu0
  %v555 = vadd.f32 %v371, %v554
  %v556 = vpop.f32.mrb[0].mxu0
  %557 = vmatprep.mubr.bf16.mxu0 %v316
  %558 = vmatmul.mubr.bf16.gmra.mrb[0].mxu0 %v315
  %v559 = vpop.f32.mrb[0].mxu0
  %v560 = vadd.f32 %v371, %v559
  %v561 = vpop.f32.mrb[0].mxu0
  %v562 = vpop.f32.mrb[0].mxu0
  %v563 = vadd.f32 %v371, %v562
  %v564 = vpop.f32.mrb[0].mxu0
  %565 = vdwg.mxu0
  %566 = vmatprep.subr.bf16.mxu0 0
  %567 = vmatpush1.bf16.msra.mxu0 %v485
  %568 = vmatprep.subr.bf16.mxu0 0
  %569 = vmatpush1.bf16.msra.mxu0 %v486
  %570 = vmatprep.subr.bf16.mxu0 0
  %571 = vmatpush1.bf16.msra.mxu0 %v487
  %572 = vmatprep.subr.bf16.mxu0 0
  %573 = vmatpush1.bf16.msra.mxu0 %v488
  %574 = vmatprep.subr.bf16.mxu0 0
  %575 = vmatpush1.bf16.msra.mxu0 %v489
  %576 = vmatprep.subr.bf16.mxu0 0
  %577 = vmatpush1.bf16.msra.mxu0 %v490
  %578 = vmatprep.subr.bf16.mxu0 0
  %579 = vmatpush1.bf16.msra.mxu0 %v491
  %580 = vmatprep.subr.bf16.mxu0 0
  %581 = vmatpush1.bf16.msra.mxu0 %v492
  %582 = vmatprep.subr.bf16.mxu0 0
  %583 = vmatpush1.bf16.msra.mxu0 0
  %584 = vmatprep.subr.bf16.mxu0 0
  %585 = vmatpush1.bf16.msra.mxu0 0
  %586 = vmatprep.subr.bf16.mxu0 0
  %587 = vmatpush1.bf16.msra.mxu0 0
  %588 = vmatprep.subr.bf16.mxu0 0
  %589 = vmatpush1.bf16.msra.mxu0 0
  %590 = vmatprep.subr.bf16.mxu0 0
  %591 = vmatpush1.bf16.msra.mxu0 0
  %592 = vmatprep.subr.bf16.mxu0 0
  %593 = vmatpush1.bf16.msra.mxu0 0
  %594 = vmatprep.subr.bf16.mxu0 0
  %595 = vmatpush1.bf16.msra.mxu0 0
  %596 = vmatprep.subr.bf16.mxu0 0
  %597 = vmatpush1.bf16.msra.mxu0 0
  %598 = vmatprep.mubr.bf16.mxu0 0
  %599 = vmatmul.mubr.bf16.gmra.mrb[0].mxu0 %v314
  %v600 = vpop.f32.mrb[0].mxu0
  %v601 = vadd.f32 %v552, %v600
  %v602 = vpop.f32.mrb[0].mxu0
  %v603 = vpop.f32.mrb[0].mxu0
  %v604 = vadd.f32 %v555, %v603
  %v605 = vpop.f32.mrb[0].mxu0
  %606 = vmatprep.mubr.bf16.mxu0 0
  %607 = vmatmul.mubr.bf16.gmra.mrb[0].mxu0 %v317
  %v608 = vpop.f32.mrb[0].mxu0
  %v609 = vadd.f32 %v560, %v608
  %v610 = vpop.f32.mrb[0].mxu0
  %v611 = vpop.f32.mrb[0].mxu0
  %v612 = vadd.f32 %v563, %v611
  %v613 = vpop.f32.mrb[0].mxu0
  %614 = vdwg.mxu0
  %v615 = vmax.f32 %v601, 0.0
  %v616 = vmax.f32 %v604, 0.0
  %v617 = vmax.f32 %v609, 0.0
  %v618 = vmax.f32 %v612, 0.0
  %619 = vst [vmem:[%s5] sm:$0xff] %v615
  %620 = vst [vmem:[%s5 + $0x8] sm:$0xff] %v616
  %621 = vst [vmem:[%s5 + $0x10] sm:$0xff] %v617
  %622 = vst [vmem:[%s5 + $0x18] sm:$0xff] %v618
  %v627 = vcombine.high %v615, %v615
  %v629 = vunpack.c.l.s4 1983009808
  %v630 = vunpack.c.0.s8 %v629
  %v631 = vlaneseq
  %v632 = vshrl.u32 %v631, 7
  %v633 = vsub.s32 %v630, %v632
  %v634 = vrot.slane %v615, %v633
  %v636 = vunpack.c.l.s4 1983009808
  %v637 = vunpack.c.0.s8 %v636
  %v638 = vlaneseq
  %v639 = vshrl.u32 %v638, 7
  %v640 = vsub.s32 %v637, %v639
  %v641 = vrot.slane %v627, %v640
  %v642 = vcombine.high %v634, %v634
  %v643 = vcombine.high %v641, %v641
  %v644 = vcombine.high %v616, %v616
  %v646 = vunpack.c.l.s4 1983009808
  %v647 = vunpack.c.0.s8 %v646
  %v648 = vlaneseq
  %v649 = vshrl.u32 %v648, 7
  %v650 = vsub.s32 %v647, %v649
  %v651 = vrot.slane %v616, %v650
  %v653 = vunpack.c.l.s4 1983009808
  %v654 = vunpack.c.0.s8 %v653
  %v655 = vlaneseq
  %v656 = vshrl.u32 %v655, 7
  %v657 = vsub.s32 %v654, %v656
  %v658 = vrot.slane %v644, %v657
  %v659 = vcombine.high %v651, %v651
  %v660 = vcombine.high %v658, %v658
  %v661 = vcombine.high %v617, %v617
  %v663 = vunpack.c.l.s4 1983009808
  %v664 = vunpack.c.0.s8 %v663
  %v665 = vlaneseq
  %v666 = vshrl.u32 %v665, 7
  %v667 = vsub.s32 %v664, %v666
  %v668 = vrot.slane %v617, %v667
  %v670 = vunpack.c.l.s4 1983009808
  %v671 = vunpack.c.0.s8 %v670
  %v672 = vlaneseq
  %v673 = vshrl.u32 %v672, 7
  %v674 = vsub.s32 %v671, %v673
  %v675 = vrot.slane %v661, %v674
  %v676 = vcombine.high %v668, %v668
  %v677 = vcombine.high %v675, %v675
  %v678 = vcombine.high %v618, %v618
  %v680 = vunpack.c.l.s4 1983009808
  %v681 = vunpack.c.0.s8 %v680
  %v682 = vlaneseq
  %v683 = vshrl.u32 %v682, 7
  %v684 = vsub.s32 %v681, %v683
  %v685 = vrot.slane %v618, %v684
  %v687 = vunpack.c.l.s4 1983009808
  %v688 = vunpack.c.0.s8 %v687
  %v689 = vlaneseq
  %v690 = vshrl.u32 %v689, 7
  %v691 = vsub.s32 %v688, %v690
  %v692 = vrot.slane %v678, %v691
  %v693 = vcombine.high %v685, %v685
  %v694 = vcombine.high %v692, %v692
  %vm711 = vcmask 1041408
  %v712 = vsel %vm711, %v634, -inf
  %v713 = vrot.slane %v712, 4
  %v714 = vmax.f32 %v712, %v713
  %v715 = vrot.slane %v714, 2
  %v716 = vmax.f32 %v714, %v715
  %v717 = vrot.slane %v716, 1
  %v718 = vmax.f32 %v716, %v717
  %v719 = vsel %vm711, %v642, -inf
  %v720 = vrot.slane %v719, 4
  %v721 = vmax.f32 %v719, %v720
  %v722 = vrot.slane %v721, 2
  %v723 = vmax.f32 %v721, %v722
  %v724 = vrot.slane %v723, 1
  %v725 = vmax.f32 %v723, %v724
  %v726 = vsel %vm711, %v641, -inf
  %v727 = vrot.slane %v726, 4
  %v728 = vmax.f32 %v726, %v727
  %v729 = vrot.slane %v728, 2
  %v730 = vmax.f32 %v728, %v729
  %v731 = vrot.slane %v730, 1
  %v732 = vmax.f32 %v730, %v731
  %v733 = vsel %vm711, %v643, -inf
  %v734 = vrot.slane %v733, 4
  %v735 = vmax.f32 %v733, %v734
  %v736 = vrot.slane %v735, 2
  %v737 = vmax.f32 %v735, %v736
  %v738 = vrot.slane %v737, 1
  %v739 = vmax.f32 %v737, %v738
  %v740 = vsel %vm711, %v651, -inf
  %v741 = vrot.slane %v740, 4
  %v742 = vmax.f32 %v740, %v741
  %v743 = vrot.slane %v742, 2
  %v744 = vmax.f32 %v742, %v743
  %v745 = vrot.slane %v744, 1
  %v746 = vmax.f32 %v744, %v745
  %v747 = vsel %vm711, %v659, -inf
  %v748 = vrot.slane %v747, 4
  %v749 = vmax.f32 %v747, %v748
  %v750 = vrot.slane %v749, 2
  %v751 = vmax.f32 %v749, %v750
  %v752 = vrot.slane %v751, 1
  %v753 = vmax.f32 %v751, %v752
  %v754 = vsel %vm711, %v658, -inf
  %v755 = vrot.slane %v754, 4
  %v756 = vmax.f32 %v754, %v755
  %v757 = vrot.slane %v756, 2
  %v758 = vmax.f32 %v756, %v757
  %v759 = vrot.slane %v758, 1
  %v760 = vmax.f32 %v758, %v759
  %v761 = vsel %vm711, %v660, -inf
  %v762 = vrot.slane %v761, 4
  %v763 = vmax.f32 %v761, %v762
  %v764 = vrot.slane %v763, 2
  %v765 = vmax.f32 %v763, %v764
  %v766 = vrot.slane %v765, 1
  %v767 = vmax.f32 %v765, %v766
  %v768 = vsel %vm711, %v668, -inf
  %v769 = vrot.slane %v768, 4
  %v770 = vmax.f32 %v768, %v769
  %v771 = vrot.slane %v770, 2
  %v772 = vmax.f32 %v770, %v771
  %v773 = vrot.slane %v772, 1
  %v774 = vmax.f32 %v772, %v773
  %v775 = vsel %vm711, %v676, -inf
  %v776 = vrot.slane %v775, 4
  %v777 = vmax.f32 %v775, %v776
  %v778 = vrot.slane %v777, 2
  %v779 = vmax.f32 %v777, %v778
  %v780 = vrot.slane %v779, 1
  %v781 = vmax.f32 %v779, %v780
  %v782 = vsel %vm711, %v675, -inf
  %v783 = vrot.slane %v782, 4
  %v784 = vmax.f32 %v782, %v783
  %v785 = vrot.slane %v784, 2
  %v786 = vmax.f32 %v784, %v785
  %v787 = vrot.slane %v786, 1
  %v788 = vmax.f32 %v786, %v787
  %v789 = vsel %vm711, %v677, -inf
  %v790 = vrot.slane %v789, 4
  %v791 = vmax.f32 %v789, %v790
  %v792 = vrot.slane %v791, 2
  %v793 = vmax.f32 %v791, %v792
  %v794 = vrot.slane %v793, 1
  %v795 = vmax.f32 %v793, %v794
  %v796 = vsel %vm711, %v685, -inf
  %v797 = vrot.slane %v796, 4
  %v798 = vmax.f32 %v796, %v797
  %v799 = vrot.slane %v798, 2
  %v800 = vmax.f32 %v798, %v799
  %v801 = vrot.slane %v800, 1
  %v802 = vmax.f32 %v800, %v801
  %v803 = vsel %vm711, %v693, -inf
  %v804 = vrot.slane %v803, 4
  %v805 = vmax.f32 %v803, %v804
  %v806 = vrot.slane %v805, 2
  %v807 = vmax.f32 %v805, %v806
  %v808 = vrot.slane %v807, 1
  %v809 = vmax.f32 %v807, %v808
  %v810 = vsel %vm711, %v692, -inf
  %v811 = vrot.slane %v810, 4
  %v812 = vmax.f32 %v810, %v811
  %v813 = vrot.slane %v812, 2
  %v814 = vmax.f32 %v812, %v813
  %v815 = vrot.slane %v814, 1
  %v816 = vmax.f32 %v814, %v815
  %v817 = vsel %vm711, %v694, -inf
  %v818 = vrot.slane %v817, 4
  %v819 = vmax.f32 %v817, %v818
  %v820 = vrot.slane %v819, 2
  %v821 = vmax.f32 %v819, %v820
  %v822 = vrot.slane %v821, 1
  %v823 = vmax.f32 %v821, %v822
  %vm840 = vcmask 1041409
  %v841 = vsel %vm840, %v725, %v718
  %vm842 = vcmask 1042434
  %v843 = vsel %vm842, %v732, %v841
  %vm844 = vcmask 1043459
  %v845 = vsel %vm844, %v739, %v843
  %vm846 = vcmask 1044484
  %v847 = vsel %vm846, %v746, %v845
  %vm848 = vcmask 1045509
  %v849 = vsel %vm848, %v753, %v847
  %vm850 = vcmask 1046534
  %v851 = vsel %vm850, %v760, %v849
  %vm852 = vcmask 1047559
  %v853 = vsel %vm852, %v767, %v851
  %v854 = vsel %vm840, %v781, %v774
  %v855 = vsel %vm842, %v788, %v854
  %v856 = vsel %vm844, %v795, %v855
  %v857 = vsel %vm846, %v802, %v856
  %v858 = vsel %vm848, %v809, %v857
  %v859 = vsel %vm850, %v816, %v858
  %v860 = vsel %vm852, %v823, %v859
  %863 = vrot.lane.b32.xlu0 %v853, 120
  %v864 = vpop.permute.xlu0 %863
  %865 = vrot.lane.b32.xlu0 %v860, 120
  %v866 = vpop.permute.xlu0 %865
  %v869 = vrot.slane %v864, 1
  %v870 = vrot.slane %v864, 2
  %v871 = vrot.slane %v864, 3
  %v872 = vrot.slane %v864, 4
  %v873 = vrot.slane %v864, 5
  %v874 = vrot.slane %v864, 6
  %v875 = vrot.slane %v864, 7
  %v876 = vrot.slane %v866, 1
  %v877 = vrot.slane %v866, 2
  %v878 = vrot.slane %v866, 3
  %v879 = vrot.slane %v866, 4
  %v880 = vrot.slane %v866, 5
  %v881 = vrot.slane %v866, 6
  %v882 = vrot.slane %v866, 7
  %v899 = vmax.f32 %v718, %v864
  %v900 = vmax.f32 %v725, %v869
  %v901 = vmax.f32 %v732, %v870
  %v902 = vmax.f32 %v739, %v871
  %v903 = vmax.f32 %v746, %v872
  %v904 = vmax.f32 %v753, %v873
  %v905 = vmax.f32 %v760, %v874
  %v906 = vmax.f32 %v767, %v875
  %v907 = vmax.f32 %v774, %v866
  %v908 = vmax.f32 %v781, %v876
  %v909 = vmax.f32 %v788, %v877
  %v910 = vmax.f32 %v795, %v878
  %v911 = vmax.f32 %v802, %v879
  %v912 = vmax.f32 %v809, %v880
  %v913 = vmax.f32 %v816, %v881
  %v914 = vmax.f32 %v823, %v882
  %v931 = vrot.slane %v900, 7
  %v932 = vsel %vm840, %v931, %v899
  %v933 = vrot.slane %v901, 6
  %v934 = vsel %vm842, %v933, %v932
  %v935 = vrot.slane %v902, 5
  %v936 = vsel %vm844, %v935, %v934
  %v937 = vrot.slane %v903, 4
  %v938 = vsel %vm846, %v937, %v936
  %v939 = vrot.slane %v904, 3
  %v940 = vsel %vm848, %v939, %v938
  %v941 = vrot.slane %v905, 2
  %v942 = vsel %vm850, %v941, %v940
  %v943 = vrot.slane %v906, 1
  %v944 = vsel %vm852, %v943, %v942
  %v945 = vrot.slane %v908, 7
  %v946 = vsel %vm840, %v945, %v907
  %v947 = vrot.slane %v909, 6
  %v948 = vsel %vm842, %v947, %v946
  %v949 = vrot.slane %v910, 5
  %v950 = vsel %vm844, %v949, %v948
  %v951 = vrot.slane %v911, 4
  %v952 = vsel %vm846, %v951, %v950
  %v953 = vrot.slane %v912, 3
  %v954 = vsel %vm848, %v953, %v952
  %v955 = vrot.slane %v913, 2
  %v956 = vsel %vm850, %v955, %v954
  %v957 = vrot.slane %v914, 1
  %v958 = vsel %vm852, %v957, %v956
  %961 = vst [vmem:[%s6] sm:$0xff] %v944
  %962 = vst [vmem:[%s6 + $0x8] sm:$0xff] %v958
  // Predicated region
  $region22: #{conv_block_down.1} parent=0 // pred_check
    _
  $region23: #{conv_block_down.1} parent=0 // pred_check_branch
    %964 = sbr.rel (0) target = $region25
  $region24: #{conv_block_down.1} parent=0 // pred_region
    _
  $region25: #{conv_block_down.1} parent=0 // pred_fallthru
    _
  // Predicated region
  $region26: #{conv_block_down.1} parent=0 // pred_check
    _
  $region27: #{conv_block_down.1} parent=0 // pred_check_branch
    %966 = sbr.rel (0) target = $region29
  $region28: #{conv_block_down.1} parent=0 // pred_region
    _
  $region29: #{conv_block_down.1} parent=0 // pred_fallthru
    _
  // Predicated region
  $region30: #{conv_block_down.1} parent=0 // pred_check
    _
  $region31: #{conv_block_down.1} parent=0 // pred_check_branch
    %968 = sbr.rel (0) target = $region33
  $region32: #{conv_block_down.1} parent=0 // pred_region
    _
  $region33: #{conv_block_down.1} parent=0 // pred_fallthru
    _
  // Predicated region
  $region34: #{conv_block_down.1} parent=0 // pred_check
    _
  $region35: #{conv_block_down.1} parent=0 // pred_check_branch
    %970 = sbr.rel (0) target = $region37
  $region36: #{conv_block_down.1} parent=0 // pred_region
    _
  $region37: #{conv_block_down.1} parent=0 // pred_fallthru
    _

</llo_original>
